<compile_context>
chip_gen: v7x
topology: tpu7x:2x2x1
jax: 0.10.0
libtpu: 0.0.40
codegen_flags: <defaults>
</compile_context>

<pallas_src>
import jax
import jax.numpy as jnp
from jax.experimental import pallas as pl
from jax.experimental.pallas import tpu as pltpu


def _cdiv(a: int, b: int) -> int:
    return (a + b - 1) // b


def _round_up(v: int, m: int) -> int:
    return _cdiv(v, m) * m


def _vmem_budget_bytes() -> int:
    """Generation-aware scoped-VMEM budget (v7x has 64 MiB, v5e/v6e 128 MiB)."""
    try:
        cap = int(pltpu.get_tpu_info().vmem_capacity_bytes)
    except Exception:
        cap = 64 * 1024 * 1024  # conservative fallback (v7x-sized)
    return min(cap // 2, 48 * 1024 * 1024)


def _make_nll_kernel(n_total: int, tn: int, tc: int, tiles_per_core: int,
                     tiny: float):
    def kernel(x_ref, y_ref, o_ref, picked_ref):
        p = pl.program_id(0)          # core (parallel)
        i = pl.program_id(1)          # row tile within this core (arbitrary)
        j = pl.program_id(2)          # C tile (arbitrary, innermost)
        last_j = pl.num_programs(2) - 1

        # Per-core unscaled partial sum lives directly in o_ref; its block
        # index is constant across both arbitrary axes, so it stays resident
        # in VMEM for the whole core-local sweep.
        @pl.when(jnp.logical_and(i == 0, j == 0))
        def _():
            o_ref[...] = jnp.zeros_like(o_ref)

        # Per-row picked-probability accumulator, reset for each new row tile.
        @pl.when(j == 0)
        def _():
            picked_ref[...] = jnp.zeros_like(picked_ref)

        x = x_ref[...]                                     # (tn, tc), input dtype
        y = y_ref[...]                                     # (tn, 1), int32

        # Select the label column within this C block. Scalar zero (no (tn,tc)
        # broadcast) and the sum stays in the input dtype — exact, since at
        # most one element per row is nonzero. Padded columns of a partial
        # last C block have global col >= C, which never matches a label.
        col = j * tc + jax.lax.broadcasted_iota(jnp.int32, x.shape, 1)
        sel = jnp.where(col == y, x, jnp.zeros((), dtype=x.dtype))
        picked_ref[...] += jnp.sum(sel, axis=1, keepdims=True).astype(jnp.float32)

        # Last C block for this row tile: log only the tn picked values,
        # mask rows past the true N (kept as a *select*, never a multiply,
        # so log of garbage in padded rows cannot propagate NaNs), and
        # accumulate into the per-core partial.
        @pl.when(j == last_j)
        def _():
            row0 = (p * tiles_per_core + i) * tn
            row = row0 + jax.lax.broadcasted_iota(jnp.int32, (tn, 1), 0)
            valid = row < n_total                          # (tn, 1) bool
            picked = jnp.where(valid, picked_ref[...], jnp.float32(1.0))
            contrib = jnp.where(valid,
                                jnp.log(picked + jnp.float32(tiny)),
                                jnp.float32(0.0))
            o_ref[...] += jnp.sum(contrib).reshape(1, 1, 1)

    return kernel


def nll_loss(x: jax.Array, y: jax.Array, reduction: str = "mean",
             *, block_rows: int | None = None,
             block_cols: int | None = None) -> jax.Array:
    """x: [N, C] probabilities (f32/bf16), y: [N] int labels -> scalar loss."""
    assert x.ndim == 2, "expected [N, C] input"
    assert reduction in ("mean", "sum"), "only 'mean'/'sum' reductions supported"
    n, c = x.shape
    itemsize = jnp.dtype(x.dtype).itemsize

    # tiny matches torch.finfo(x.dtype).tiny (pml_cf.small_val).
    tiny = float(jnp.finfo(x.dtype).tiny)
    scale = (-1.0 / n) if reduction == "mean" else -1.0

    num_cores = 2        # v7x has 2 TCs; a 2-long parallel axis is harmless on v5e/v6e.
    sub = 16 if itemsize < 4 else 8          # sublane multiple (bf16 packs 16)

    # ---- byte-sized tiling under an explicit VMEM budget ----
    vmem_budget = _vmem_budget_bytes()
    # x is double-buffered; leave ~4 MiB slack for labels / scratch / output.
    max_tile_bytes = max((vmem_budget - (4 << 20)) // 2, 1 << 20)
    target_tile_bytes = min(4 << 20, max_tile_bytes)

    if c * itemsize * sub <= target_tile_bytes:
        # Full-C path: one C block, rows sized by bytes.
        auto_tc = c
        rows_fit = max(target_tile_bytes // (c * itemsize), sub)
        auto_tn = (rows_fit // sub) * sub
        # Keep at least one row block per core when possible (v7x split).
        auto_tn = min(auto_tn, _round_up(_cdiv(n, num_cores), sub))
        if auto_tn >= n:
            auto_tn = n
    else:
        # Vocab-scale C: tile the class dimension as well.
        auto_tn = min(sub, n)
        auto_tc = (target_tile_bytes // (auto_tn * itemsize) // 128) * 128
        auto_tc = int(min(max(auto_tc, 128), c))

    tn = block_rows if block_rows is not None else auto_tn
    tc = block_cols if block_cols is not None else auto_tc

    n_row_blocks = _cdiv(n, tn)
    tiles_per_core = _cdiv(n_row_blocks, num_cores)
    c_blocks = _cdiv(c, tc)
    last_row_block = n_row_blocks - 1

    # Clamp the row-block index so out-of-range (core-padding) grid steps DMA
    # an in-bounds block; their contribution is masked to zero in-kernel.
    def x_map(p, i, j):
        return (jnp.minimum(p * tiles_per_core + i, last_row_block), j)

    def y_map(p, i, j):
        return (jnp.minimum(p * tiles_per_core + i, last_row_block), 0)

    def o_map(p, i, j):
        return (p, 0, 0)

    y2d = y.astype(jnp.int32).reshape(n, 1)
    kernel = _make_nll_kernel(n, tn, tc, tiles_per_core, tiny)

    partials = pl.pallas_call(
        kernel,
        out_shape=jax.ShapeDtypeStruct((num_cores, 1, 1), jnp.float32),
        grid_spec=pltpu.PrefetchScalarGridSpec(
            num_scalar_prefetch=0,
            grid=(num_cores, tiles_per_core, c_blocks),
            in_specs=[
                pl.BlockSpec((tn, tc), x_map),             # streamed prob tile
                pl.BlockSpec((tn, 1), y_map),              # streamed label tile
            ],
            out_specs=pl.BlockSpec((1, 1, 1), o_map),      # per-core resident partial
            scratch_shapes=[pltpu.VMEM((tn, 1), jnp.float32)],  # picked probs
        ),
        compiler_params=pltpu.CompilerParams(
            dimension_semantics=("parallel", "arbitrary", "arbitrary"),
            vmem_limit_bytes=vmem_budget,
        ),
        cost_estimate=pl.CostEstimate(
            flops=3 * n * c,
            transcendentals=n,
            bytes_accessed=n * c * itemsize + n * 4 + num_cores * 4,
        ),
    )(x, y2d)

    return jnp.sum(partials) * jnp.float32(scale)


def _ref_nll(x, y, reduction="mean"):
    tiny = float(jnp.finfo(x.dtype).tiny)
    logp = jnp.log(x.astype(jnp.float32) + tiny)
    picked = logp[jnp.arange(x.shape[0]), y]
    return -jnp.mean(picked) if reduction == "mean" else -jnp.sum(picked)


if __name__ == "__main__":
    key = jax.random.PRNGKey(0)
    k1, k2, k3, k4, k5, k6, k7, k8 = jax.random.split(key, 8)

    # --- 1. small shape consistent with the module (batch=8, classes=32) ---
    N, C = 8, 32
    x = jax.nn.softmax(jax.random.normal(k1, (N, C), dtype=jnp.float32), axis=-1)
    y = jax.random.randint(k2, (N,), 0, C, dtype=jnp.int32)
    loss = jax.block_until_ready(nll_loss(x, y))
    ref = _ref_nll(x, y)
    assert jnp.allclose(loss, ref, rtol=1e-6, atol=1e-6), (loss, ref)

    # --- 2. tiled rows + dual-core split + remainder-row masking ---
    N2, C2 = 600, 128
    x2 = jax.nn.softmax(jax.random.normal(k3, (N2, C2), dtype=jnp.float32), axis=-1)
    y2 = jax.random.randint(k4, (N2,), 0, C2, dtype=jnp.int32)
    loss2 = jax.block_until_ready(nll_loss(x2, y2))
    ref2 = _ref_nll(x2, y2)
    assert jnp.allclose(loss2, ref2, rtol=1e-5, atol=1e-6), (loss2, ref2)

    # --- 3. forced C-axis tiling (exercises the large-C path) + 'sum' ---
    N3, C3 = 64, 384
    x3 = jax.nn.softmax(jax.random.normal(k5, (N3, C3), dtype=jnp.float32), axis=-1)
    y3 = jax.random.randint(k6, (N3,), 0, C3, dtype=jnp.int32)
    loss3 = jax.block_until_ready(
        nll_loss(x3, y3, reduction="sum", block_rows=16, block_cols=128))
    ref3 = _ref_nll(x3, y3, reduction="sum")
    assert jnp.allclose(loss3, ref3, rtol=1e-5, atol=1e-6), (loss3, ref3)

    # --- 4. bf16 input (select in input dtype, f32 pick/accumulate) ---
    N4, C4 = 64, 128
    x4 = jax.nn.softmax(
        jax.random.normal(k7, (N4, C4), dtype=jnp.float32), axis=-1
    ).astype(jnp.bfloat16)
    y4 = jax.random.randint(k8, (N4,), 0, C4, dtype=jnp.int32)
    loss4 = jax.block_until_ready(nll_loss(x4, y4))
    ref4 = _ref_nll(x4, y4)
    assert jnp.allclose(loss4, ref4, rtol=1e-5, atol=1e-6), (loss4, ref4)

    print("KERNEL_OK")
</pallas_src>

<mosaic_0001>
module attributes {stable_mosaic.version = 11 : i64} {
  func.func @kernel(%arg0: i32, %arg1: i32, %arg2: i32, %arg3: memref<8x32xf32, #tpu.memory_space<vmem>>, %arg4: memref<8x1xi32, #tpu.memory_space<vmem>>, %arg5: memref<1x1x1xf32, #tpu.memory_space<vmem>>, %arg6: memref<8x1xf32, #tpu.memory_space<vmem>>) attributes {dimension_semantics = [#tpu.dimension_semantics<parallel>, #tpu.dimension_semantics<arbitrary>, #tpu.dimension_semantics<arbitrary>], iteration_bounds = array<i64: 2, 1, 1>, scalar_prefetch = 0 : i64, scratch_operands = 1 : i64, tpu.core_type = #tpu.core_type<tc>, window_params = [{transform_indices = @transform_0, window_bounds = array<i64: 8, 32>}, {transform_indices = @transform_1, window_bounds = array<i64: 8, 1>}, {transform_indices = @transform_2, window_bounds = array<i64: 1, 1, 1>}]} {
    %c0_i32 = arith.constant 0 : i32
    %0 = arith.cmpi eq, %arg1, %c0_i32 : i32
    %c0_i32_0 = arith.constant 0 : i32
    %1 = arith.cmpi eq, %arg2, %c0_i32_0 : i32
    %2 = arith.andi %0, %1 : i1
    %3 = arith.extui %2 : i1 to i32
    %c0_i32_1 = arith.constant 0 : i32
    %4 = arith.cmpi ne, %3, %c0_i32_1 : i32
    scf.if %4 {
      %cst_14 = arith.constant 0.000000e+00 : f32
      %26 = vector.broadcast %cst_14 : f32 to vector<1x1x1xf32>
      %c0_15 = arith.constant 0 : index
      %c0_16 = arith.constant 0 : index
      %c0_17 = arith.constant 0 : index
      %27 = vector.load %arg5[%c0_15, %c0_16, %c0_17] : memref<1x1x1xf32, #tpu.memory_space<vmem>>, vector<1x1x1xf32>
      tpu.vector_store %arg5[%c0_15, %c0_16, %c0_17], %26 {strides = array<i32>} : memref<1x1x1xf32, #tpu.memory_space<vmem>>, vector<1x1x1xf32>,
    } else {
    }
    %c0_i32_2 = arith.constant 0 : i32
    %5 = arith.cmpi eq, %arg2, %c0_i32_2 : i32
    %6 = arith.extui %5 : i1 to i32
    %c0_i32_3 = arith.constant 0 : i32
    %7 = arith.cmpi ne, %6, %c0_i32_3 : i32
    scf.if %7 {
      %cst_14 = arith.constant 0.000000e+00 : f32
      %26 = vector.broadcast %cst_14 : f32 to vector<8x1xf32>
      %c0_15 = arith.constant 0 : index
      %c0_16 = arith.constant 0 : index
      %27 = vector.load %arg6[%c0_15, %c0_16] : memref<8x1xf32, #tpu.memory_space<vmem>>, vector<8x1xf32>
      tpu.vector_store %arg6[%c0_15, %c0_16], %26 {strides = array<i32>} : memref<8x1xf32, #tpu.memory_space<vmem>>, vector<8x1xf32>,
    } else {
    }
    %c0 = arith.constant 0 : index
    %c0_4 = arith.constant 0 : index
    %8 = vector.load %arg3[%c0, %c0_4] : memref<8x32xf32, #tpu.memory_space<vmem>>, vector<8x32xf32>
    %c0_5 = arith.constant 0 : index
    %c0_6 = arith.constant 0 : index
    %9 = vector.load %arg4[%c0_5, %c0_6] : memref<8x1xi32, #tpu.memory_space<vmem>>, vector<8x1xi32>
    %c32_i32 = arith.constant 32 : i32
    %10 = arith.muli %arg2, %c32_i32 : i32
    %11 = tpu.iota {dimensions = array<i32: 1>} : vector<8x32xi32>
    %12 = vector.broadcast %10 : i32 to vector<8x32xi32>
    %13 = arith.addi %12, %11 : vector<8x32xi32>
    %14 = vector.broadcast %9 : vector<8x1xi32> to vector<8x32xi32>
    %15 = arith.cmpi eq, %13, %14 : vector<8x32xi32>
    %cst = arith.constant 0.000000e+00 : f32
    %16 = vector.broadcast %cst : f32 to vector<8x32xf32>
    %17 = arith.select %15, %8, %16 : vector<8x32xi1>, vector<8x32xf32>
    %c0_7 = arith.constant 0 : index
    %c0_8 = arith.constant 0 : index
    %18 = vector.load %arg6[%c0_7, %c0_8] : memref<8x1xf32, #tpu.memory_space<vmem>>, vector<8x1xf32>
    %cst_9 = arith.constant dense<0.000000e+00> : vector<8xf32>
    %19 = vector.multi_reduction <add>, %17, %cst_9 [1] : vector<8x32xf32> to vector<8xf32>
    %20 = vector.shape_cast %19 : vector<8xf32> to vector<8x1xf32>
    %21 = arith.addf %18, %20 : vector<8x1xf32>
    %c0_10 = arith.constant 0 : index
    %c0_11 = arith.constant 0 : index
    %22 = vector.load %arg6[%c0_10, %c0_11] : memref<8x1xf32, #tpu.memory_space<vmem>>, vector<8x1xf32>
    tpu.vector_store %arg6[%c0_10, %c0_11], %21 {strides = array<i32>} : memref<8x1xf32, #tpu.memory_space<vmem>>, vector<8x1xf32>,
    %c0_i32_12 = arith.constant 0 : i32
    %23 = arith.cmpi eq, %arg2, %c0_i32_12 : i32
    %24 = arith.extui %23 : i1 to i32
    %c0_i32_13 = arith.constant 0 : i32
    %25 = arith.cmpi ne, %24, %c0_i32_13 : i32
    scf.if %25 {
      %c1_i32 = arith.constant 1 : i32
      %26 = arith.muli %arg0, %c1_i32 : i32
      %27 = arith.addi %26, %arg1 : i32
      %c8_i32 = arith.constant 8 : i32
      %28 = arith.muli %27, %c8_i32 : i32
      %29 = tpu.iota {dimensions = array<i32: 0>} : vector<8x1xi32>
      %30 = vector.broadcast %28 : i32 to vector<8x1xi32>
      %31 = arith.addi %30, %29 : vector<8x1xi32>
      %c8_i32_14 = arith.constant 8 : i32
      %32 = vector.broadcast %c8_i32_14 : i32 to vector<8x1xi32>
      %33 = arith.cmpi slt, %31, %32 : vector<8x1xi32>
      %c0_15 = arith.constant 0 : index
      %c0_16 = arith.constant 0 : index
      %34 = vector.load %arg6[%c0_15, %c0_16] : memref<8x1xf32, #tpu.memory_space<vmem>>, vector<8x1xf32>
      %cst_17 = arith.constant 1.000000e+00 : f32
      %35 = vector.broadcast %cst_17 : f32 to vector<8x1xf32>
      %36 = arith.select %33, %34, %35 : vector<8x1xi1>, vector<8x1xf32>
      %cst_18 = arith.constant 1.17549435E-38 : f32
      %37 = vector.broadcast %cst_18 : f32 to vector<8x1xf32>
      %38 = arith.addf %36, %37 : vector<8x1xf32>
      %39 = math.log %38 : vector<8x1xf32>
      %cst_19 = arith.constant 0.000000e+00 : f32
      %40 = vector.broadcast %cst_19 : f32 to vector<8x1xf32>
      %41 = arith.select %33, %39, %40 : vector<8x1xi1>, vector<8x1xf32>
      %c0_20 = arith.constant 0 : index
      %c0_21 = arith.constant 0 : index
      %c0_22 = arith.constant 0 : index
      %42 = vector.load %arg5[%c0_20, %c0_21, %c0_22] : memref<1x1x1xf32, #tpu.memory_space<vmem>>, vector<1x1x1xf32>
      %43 = vector.shape_cast %41 : vector<8x1xf32> to vector<1x8x1xf32>
      %cst_23 = arith.constant dense<0.000000e+00> : vector<1xf32>
      %44 = vector.multi_reduction <add>, %43, %cst_23 [1, 2] : vector<1x8x1xf32> to vector<1xf32>
      %45 = vector.shape_cast %44 : vector<1xf32> to vector<1x1x1xf32>
      %46 = vector.extract %45[0, 0, 0] : f32 from vector<1x1x1xf32>
      %47 = vector.broadcast %46 : f32 to vector<1x1x1xf32>
      %48 = arith.addf %42, %47 : vector<1x1x1xf32>
      %c0_24 = arith.constant 0 : index
      %c0_25 = arith.constant 0 : index
      %c0_26 = arith.constant 0 : index
      %49 = vector.load %arg5[%c0_24, %c0_25, %c0_26] : memref<1x1x1xf32, #tpu.memory_space<vmem>>, vector<1x1x1xf32>
      tpu.vector_store %arg5[%c0_24, %c0_25, %c0_26], %48 {strides = array<i32>} : memref<1x1x1xf32, #tpu.memory_space<vmem>>, vector<1x1x1xf32>,
    } else {
    }
    return
  }
  func.func @transform_0(%arg0: i32, %arg1: i32, %arg2: i32) -> (i32, i32) {
    %c1_i32 = arith.constant 1 : i32
    %0 = arith.muli %arg0, %c1_i32 : i32
    %1 = arith.addi %0, %arg1 : i32
    %c0_i32 = arith.constant 0 : i32
    %2 = arith.minsi %1, %c0_i32 : i32
    %c0_i32_0 = arith.constant 0 : i32
    return %2, %arg2 : i32, i32
  }
  func.func @transform_1(%arg0: i32, %arg1: i32, %arg2: i32) -> (i32, i32) {
    %c1_i32 = arith.constant 1 : i32
    %0 = arith.muli %arg0, %c1_i32 : i32
    %1 = arith.addi %0, %arg1 : i32
    %c0_i32 = arith.constant 0 : i32
    %2 = arith.minsi %1, %c0_i32 : i32
    %c0_i32_0 = arith.constant 0 : i32
    %c0_i32_1 = arith.constant 0 : i32
    return %2, %c0_i32_0 : i32, i32
  }
  func.func @transform_2(%arg0: i32, %arg1: i32, %arg2: i32) -> (i32, i32, i32) {
    %c0_i32 = arith.constant 0 : i32
    %c0_i32_0 = arith.constant 0 : i32
    %c0_i32_1 = arith.constant 0 : i32
    return %arg0, %c0_i32, %c0_i32_0 : i32, i32, i32
  }
}

</mosaic_0001>

<llo_original>
// kernel: tpu_custom_call.1
$region0: #{tpu_custom_call.1}
  #allocation0 [shape = 'u32[]', space=smem, size = 0x4, offset = 0x4, fixed_abs, tag = 'smem constant byte address 0x4 - core index']
  #allocation1 [shape = 'u32[144,128]{1,0:T(1,128)}', space=vmem, size = 0x12000, scoped, tag = 'internal scratch']
  #allocation2 [shape = 'f32[8,1]{1,0:T(8,128)}', space=vmem, size = 0x1000, scoped, tag = 'scratch operand']
  %s0 = inlined_call_operand.vmem [shape: f32[8,32], index: 0, kind: input, shape index: {}]
  %s1 = inlined_call_operand.vmem [shape: s32[8,1], index: 1, kind: input, shape index: {}]
  %s2 = inlined_call_operand.vmem [shape: f32[2,1,1], index: 2, kind: output, shape index: {}]
  %s3 = sld [smem:[#allocation0]]
  $region53: #{tpu_custom_call.1} parent=0
    _
  %s5 = ssub.s32 1, %s3
  %s6 = scalar_select 0, %s5, %s3
  loop: start=0, step=1, limit=4
  $region2: #{tpu_custom_call.1} parent=0 // loop_pre_header
    _
  $region3: #{tpu_custom_call.1} parent=0 // loop_header
    %s8 = sphi 0, %s12
    %p9 = scmp.ge.s32.totalorder %s8, 4
    %s15 = sphi 0, %s34
    %s16 = sphi 0, %s30
    %s17 = sphi 0, %s26
    %s18 = sphi 0, %s15
    %s19 = sphi 0, %s16
    %s20 = sphi 0, %s17
    %s21 = sphi 0, %s18
    %s22 = sphi 0, %s19
    %s23 = sphi 0, %s20
    %s45 = sphi 0, %s47
    %s48 = sphi 0, %s45
    %s49 = sphi 0, %s48
    %s65 = sphi 0, %s49
    %s77 = sphi 0, %s79
    %s80 = sphi 0, %s77
    %s81 = sphi 0, %s80
    %s97 = sphi 0, %s81
    %s103 = sphi 0, %s105
    %s106 = sphi 0, %s103
    %s107 = sphi 0, %s106
    %s123 = sphi 0, %s107
  $region4: #{tpu_custom_call.1} parent=0 // loop_header_branch
    %11 = sbr.rel (%p9) target = $region8
  $region5: #{tpu_custom_call.1} parent=0 // loop_body
    %s13 = ssub.s32 %s8, 1
    %s14 = ssub.s32 %s8, 2
    %s24 = sadd.s32 1, %s17
    %p25 = scmp.ge.s32.totalorder %s24, 1
    %s26 = scalar_select %p25, 0, %s24
    %s27 = sadd.s32 1, %s16
    %s28 = scalar_select %p25, %s27, %s16
    %p29 = scmp.ge.s32.totalorder %s28, 1
    %s30 = scalar_select %p29, 0, %s28
    %s31 = sadd.s32 1, %s15
    %s32 = scalar_select %p29, %s31, %s15
    %p33 = scmp.ge.s32.totalorder %s32, 2
    %s34 = scalar_select %p33, 0, %s32
    %s35 = sadd.s32 %s15, %s16
    %p36 = scmp.lt.s32.totalorder %s35, 0
    %s37 = scalar_select %p36, %s35, 0
    %s38 = sadd.s32 %s34, %s30
    %p39 = scmp.lt.s32.totalorder %s38, 0
    %s40 = scalar_select %p39, %s38, 0
    %s41 = ssub.s32 %s37, %s40
    %s42 = ssub.s32 %s17, %s26
    %s43 = sor.u32 %s41, %s42
    %p44 = scmp.eq.s32.totalorder %s43, 0
    %s46 = sadd.s32 %s45, 1
    %s47 = scalar_select %p44, %s45, %s46
    %p50 = pneg %p44
    %p51 = scmp.eq.s32.totalorder %s8, 1
    %p52 = por %p50, %p51
    %p53 = scmp.ne.s32.totalorder %s45, %s48
    %p54 = scmp.eq.s32.totalorder %s8, 0
    %p55 = por %p53, %p54
    %p56 = scmp.ne.s32.totalorder %s45, %s48
    %p57 = scmp.eq.s32.totalorder %s13, 1
    %p58 = por %p56, %p57
    %p59 = scmp.ne.s32.totalorder %s48, %s49
    %p60 = scmp.eq.s32.totalorder %s13, 0
    %p61 = por %p59, %p60
    %p62 = scmp.ne.s32.totalorder %s48, %s49
    %p63 = scmp.eq.s32.totalorder %s14, 1
    %p64 = por %p62, %p63
    %p66 = scmp.ne.s32.totalorder %s49, %s65
    %p67 = scmp.eq.s32.totalorder %s14, 0
    %p68 = por %p66, %p67
    %s69 = sadd.s32 %s15, %s16
    %p70 = scmp.lt.s32.totalorder %s69, 0
    %s71 = scalar_select %p70, %s69, 0
    %s72 = sadd.s32 %s34, %s30
    %p73 = scmp.lt.s32.totalorder %s72, 0
    %s74 = scalar_select %p73, %s72, 0
    %s75 = ssub.s32 %s71, %s74
    %p76 = scmp.eq.s32.totalorder %s75, 0
    %s78 = sadd.s32 %s77, 1
    %s79 = scalar_select %p76, %s77, %s78
    %p82 = pneg %p76
    %p83 = scmp.eq.s32.totalorder %s8, 1
    %p84 = por %p82, %p83
    %p85 = scmp.ne.s32.totalorder %s77, %s80
    %p86 = scmp.eq.s32.totalorder %s8, 0
    %p87 = por %p85, %p86
    %p88 = scmp.ne.s32.totalorder %s77, %s80
    %p89 = scmp.eq.s32.totalorder %s13, 1
    %p90 = por %p88, %p89
    %p91 = scmp.ne.s32.totalorder %s80, %s81
    %p92 = scmp.eq.s32.totalorder %s13, 0
    %p93 = por %p91, %p92
    %p94 = scmp.ne.s32.totalorder %s80, %s81
    %p95 = scmp.eq.s32.totalorder %s14, 1
    %p96 = por %p94, %p95
    %p98 = scmp.ne.s32.totalorder %s81, %s97
    %p99 = scmp.eq.s32.totalorder %s14, 0
    %p100 = por %p98, %p99
    %s101 = ssub.s32 %s15, %s34
    %p102 = scmp.eq.s32.totalorder %s101, 0
    %s104 = sadd.s32 %s103, 1
    %s105 = scalar_select %p102, %s103, %s104
    %p108 = pneg %p102
    %p109 = scmp.eq.s32.totalorder %s8, 1
    %p110 = por %p108, %p109
    %p111 = scmp.ne.s32.totalorder %s103, %s106
    %p112 = scmp.eq.s32.totalorder %s8, 0
    %p113 = por %p111, %p112
    %p114 = scmp.ne.s32.totalorder %s103, %s106
    %p115 = scmp.eq.s32.totalorder %s13, 1
    %p116 = por %p114, %p115
    %p117 = scmp.ne.s32.totalorder %s106, %s107
    %p118 = scmp.eq.s32.totalorder %s13, 0
    %p119 = por %p117, %p118
    %p120 = scmp.ne.s32.totalorder %s106, %s107
    %p121 = scmp.eq.s32.totalorder %s14, 1
    %p122 = por %p120, %p121
    %p124 = scmp.ne.s32.totalorder %s107, %s123
    %p125 = scmp.eq.s32.totalorder %s14, 0
    %p126 = por %p124, %p125
    %p127 = scmp.le.s32.totalorder 1, %s8
    %p128 = scmp.lt.s32.totalorder %s8, 3
    %p129 = pnand %p127, %p128
    %p130 = pneg %p129
    // Predicated region
    $region9: #{tpu_custom_call.1} parent=5 // pred_check
      _
    $region10: #{tpu_custom_call.1} parent=5 // pred_check_branch
      %132 = sbr.rel (%p129) target = $region12
    $region11: #{tpu_custom_call.1} parent=5 // pred_region
      %s133 = ssub.s32 %s8, 1
    $region12: #{tpu_custom_call.1} parent=5 // pred_fallthru
      _
    %p134 = scmp.lt.s32.totalorder %s8, 2
    // Predicated region
    $region13: #{tpu_custom_call.1} parent=5 // pred_check
      %p135 = pneg %p134
    $region14: #{tpu_custom_call.1} parent=5 // pred_check_branch
      %137 = sbr.rel (%p135) target = $region16
    $region15: #{tpu_custom_call.1} parent=5 // pred_region
      // Predicated region
      $region17: #{tpu_custom_call.1} parent=15 // pred_check
        %p138 = pneg %p55
      $region18: #{tpu_custom_call.1} parent=15 // pred_check_branch
        %140 = sbr.rel (%p138) target = $region20
      $region19: #{tpu_custom_call.1} parent=15 // pred_region
        %s141 = sadd.s32 %s15, %s16
        %p142 = scmp.lt.s32.totalorder %s141, 0
        %s143 = scalar_select %p142, %s141, 0
        %p144 = scmp.lt.s32.totalorder %s143, 0
        %s145 = scalar_select %p144, %s143, 0
        %p146 = scmp.lt.s32.totalorder %s17, 0
        %s147 = scalar_select %p146, %s17, 0
        %s148 = sadd.s32 %s147, %s145
        %s149 = smul.addr %s148, 8
        %s150 = scalar_lea.vmem %s0, %s149
        %s151 = sadd.s32 %s15, %s16
        %p152 = scmp.lt.s32.totalorder %s151, 0
        %s153 = scalar_select %p152, %s151, 0
      $region20: #{tpu_custom_call.1} parent=15 // pred_fallthru
        _
      // Predicated region
      $region21: #{tpu_custom_call.1} parent=15 // pred_check
        %p154 = pneg %p87
      $region22: #{tpu_custom_call.1} parent=15 // pred_check_branch
        %156 = sbr.rel (%p154) target = $region24
      $region23: #{tpu_custom_call.1} parent=15 // pred_region
        %s157 = sadd.s32 %s15, %s16
        %p158 = scmp.lt.s32.totalorder %s157, 0
        %s159 = scalar_select %p158, %s157, 0
        %p160 = scmp.lt.s32.totalorder %s159, 0
        %s161 = scalar_select %p160, %s159, 0
        %s162 = smul.addr %s161, 8
        %s163 = scalar_lea.vmem %s1, %s162
        %s164 = sadd.s32 %s15, %s16
        %p165 = scmp.lt.s32.totalorder %s164, 0
        %s166 = scalar_select %p165, %s164, 0
      $region24: #{tpu_custom_call.1} parent=15 // pred_fallthru
        _
    $region16: #{tpu_custom_call.1} parent=5 // pred_fallthru
      _
    %p167 = scmp.le.s32.totalorder 1, %s8
    %p168 = scmp.lt.s32.totalorder %s8, 3
    %p169 = pnand %p167, %p168
    %p170 = pneg %p169
    // Predicated region
    $region25: #{tpu_custom_call.1} parent=5 // pred_check
      _
    $region26: #{tpu_custom_call.1} parent=5 // pred_check_branch
      %172 = sbr.rel (%p169) target = $region28
    $region27: #{tpu_custom_call.1} parent=5 // pred_region
      %s173 = ssub.s32 %s8, 1
      %s174 = sadd.s32 %s18, %s19
      %p175 = scmp.lt.s32.totalorder %s174, 0
      %s176 = scalar_select %p175, %s174, 0
      %p177 = scmp.lt.s32.totalorder %s176, 0
      %s178 = scalar_select %p177, %s176, 0
      %p179 = scmp.lt.s32.totalorder %s20, 0
      %s180 = scalar_select %p179, %s20, 0
      %s181 = sadd.s32 %s180, %s178
      %s182 = smul.addr %s181, 8
      %s183 = scalar_lea.vmem %s0, %s182
      %p184 = pneg %p61
      %p185 = pneg %p58
      %s186 = sadd.s32 %s18, %s19
      %p187 = scmp.lt.s32.totalorder %s186, 0
      %s188 = scalar_select %p187, %s186, 0
      %p189 = scmp.lt.s32.totalorder %s188, 0
      %s190 = scalar_select %p189, %s188, 0
      %s191 = smul.addr %s190, 8
      %s192 = scalar_lea.vmem %s1, %s191
      %p193 = pneg %p93
      %p194 = pneg %p90
      %p195 = pneg %p119
      %p196 = pneg %p116
      %p197 = scmp.lt.s32.totalorder %s18, 1
      %s198 = scalar_select %p197, %s18, 1
      %s199 = scalar_lea.vmem %s2, %s198
      %s200 = sadd.s32 %s18, %s19
      %p201 = scmp.lt.s32.totalorder %s200, 0
      %s202 = scalar_select %p201, %s200, 0
      %p203 = scmp.lt.s32.totalorder %s202, 0
      %s204 = scalar_select %p203, %s202, 0
      %p205 = scmp.lt.s32.totalorder %s20, 0
      %s206 = scalar_select %p205, %s20, 0
      %s207 = sadd.s32 %s206, %s204
      %s208 = smul.addr %s207, 8
      %s209 = scalar_lea.vmem %s0, %s208
      %s210 = sadd.s32 %s18, %s19
      %p211 = scmp.lt.s32.totalorder %s210, 0
      %s212 = scalar_select %p211, %s210, 0
      %s213 = sadd.s32 %s18, %s19
      %p214 = scmp.lt.s32.totalorder %s213, 0
      %s215 = scalar_select %p214, %s213, 0
      %p216 = scmp.lt.s32.totalorder %s215, 0
      %s217 = scalar_select %p216, %s215, 0
      %s218 = smul.addr %s217, 8
      %s219 = scalar_lea.vmem %s1, %s218
      %s220 = sadd.s32 %s18, %s19
      %p221 = scmp.lt.s32.totalorder %s220, 0
      %s222 = scalar_select %p221, %s220, 0
      %p223 = scmp.lt.s32.totalorder %s18, 1
      %s224 = scalar_select %p223, %s18, 1
      %s225 = scalar_lea.vmem %s2, %s224
      %p226 = scmp.eq.s32.totalorder %s19, 0
      %p227 = scmp.eq.s32.totalorder %s20, 0
      %p228 = pnand %p226, %p227
      %p229 = pneg %p228
      // Predicated region
      $region29: #{tpu_custom_call.1} parent=27 // pred_check
        _
      $region30: #{tpu_custom_call.1} parent=27 // pred_check_branch
        %231 = sbr.rel (%p228) target = $region32
      $region31: #{tpu_custom_call.1} parent=27 // pred_region
        %vm232 = vcmask 0
        %233 = vst.msk [vmem:[%s225] sm:$0x1] %vm232, 0.0
      $region32: #{tpu_custom_call.1} parent=27 // pred_fallthru
        _
      // Predicated region
      $region33: #{tpu_custom_call.1} parent=27 // pred_check
        %p234 = pneg %p227
      $region34: #{tpu_custom_call.1} parent=27 // pred_check_branch
        %236 = sbr.rel (%p234) target = $region36
      $region35: #{tpu_custom_call.1} parent=27 // pred_region
        %vm237 = vcmask 7168
        %238 = vst.msk [vmem:[#allocation2] sm:$0xff] %vm237, 0.0
      $region36: #{tpu_custom_call.1} parent=27 // pred_fallthru
        _
      %v239 = vld [vmem:[%s209] sm:$0xff]
      %v240 = vld [vmem:[%s219] sm:$0xff]
      %s241 = smul.u32 %s20, 32
      %v242 = vlaneseq
      %v243 = vand.u32 %v242, 127
      %v244 = vstv %s241
      %v245 = vadd.s32 %v244, %v243
      %246 = vset.pattern.permute.xlu0 0
      %247 = vperm.xlu0 %246, %v240
      %v248 = vpop.permute.xlu0 %247
      %vm249 = vcmp.eq.s32.totalorder %v245, %v248
      %v250 = vsel %vm249, %v239, 0.0
      %v251 = vld [vmem:[#allocation2] sm:$0xff]
      %vm252 = vcmask 261120
      %v253 = vsel %vm252, %v250, 0.0
      %254 = vadd.xlane.f32.xlu0 %v253
      %v255 = vpop.xlane.xlu0 %254
      %v256 = vadd.f32 %v251, %v255
      %vm257 = vcmask 7168
      %258 = vst.msk [vmem:[#allocation2] sm:$0xff] %vm257, %v256
      // Predicated region
      $region37: #{tpu_custom_call.1} parent=27 // pred_check
        %p259 = pneg %p227
      $region38: #{tpu_custom_call.1} parent=27 // pred_check_branch
        %261 = sbr.rel (%p259) target = $region40
      $region39: #{tpu_custom_call.1} parent=27 // pred_region
        %s262 = sadd.s32 %s18, %s19
        %s263 = smul.u32 %s262, 8
        %v264 = vlaneseq
        %v265 = vshrl.u32 %v264, 7
        %v266 = vstv %s263
        %v267 = vadd.s32 %v266, %v265
        %vm268 = vcmp.lt.s32.totalorder %v267, 8
        %v269 = vld [vmem:[#allocation2] sm:$0xff]
        %v270 = vsel %vm268, %v269, 1.0
        %v271 = vadd.f32 %v270, 1.1754944e-38
        %v272 = vlog2.pop %v271
        %v273 = vmul.f32 %v272, 0.6931472
        %v274 = vsel %vm268, %v273, 0.0
        %v275 = vld [vmem:[%s225] sm:$0x1]
        %v276 = vsel %vm257, %v274, 0.0
        %277 = vadd.xlane.f32.xlu0 %v276
        %v278 = vpop.xlane.xlu0 %277
        %v279 = vrot.slane %v278, 4
        %v280 = vadd.f32 %v278, %v279
        %v281 = vrot.slane %v280, 2
        %v282 = vadd.f32 %v280, %v281
        %v283 = vrot.slane %v282, 1
        %v284 = vadd.f32 %v282, %v283
        %s285 = vtos %v284
        %v286 = vstv %s285
        %v287 = vadd.f32 %v275, %v286
        %vm288 = vcmask 0
        %289 = vst.msk [vmem:[%s225] sm:$0x1] %vm288, %v287
      $region40: #{tpu_custom_call.1} parent=27 // pred_fallthru
        _
      %p290 = scmp.lt.s32.totalorder %s18, 1
      %s291 = scalar_select %p290, %s18, 1
      %s292 = scalar_lea.vmem %s2, %s291
      // Predicated region
      $region41: #{tpu_custom_call.1} parent=27 // pred_check
        %p293 = pneg %p116
      $region42: #{tpu_custom_call.1} parent=27 // pred_check_branch
        %295 = sbr.rel (%p293) target = $region44
      $region43: #{tpu_custom_call.1} parent=27 // pred_region
        _
      $region44: #{tpu_custom_call.1} parent=27 // pred_fallthru
        _
    $region28: #{tpu_custom_call.1} parent=5 // pred_fallthru
      _
    %p296 = scmp.le.s32.totalorder 2, %s8
    // Predicated region
    $region45: #{tpu_custom_call.1} parent=5 // pred_check
      %p297 = pneg %p296
    $region46: #{tpu_custom_call.1} parent=5 // pred_check_branch
      %299 = sbr.rel (%p297) target = $region48
    $region47: #{tpu_custom_call.1} parent=5 // pred_region
      %s300 = ssub.s32 %s8, 2
      // Predicated region
      $region49: #{tpu_custom_call.1} parent=47 // pred_check
        %p301 = pneg %p122
      $region50: #{tpu_custom_call.1} parent=47 // pred_check_branch
        %303 = sbr.rel (%p301) target = $region52
      $region51: #{tpu_custom_call.1} parent=47 // pred_region
        %p304 = scmp.lt.s32.totalorder %s21, 1
        %s305 = scalar_select %p304, %s21, 1
        %s306 = scalar_lea.vmem %s2, %s305
      $region52: #{tpu_custom_call.1} parent=47 // pred_fallthru
        _
    $region48: #{tpu_custom_call.1} parent=5 // pred_fallthru
      _
  $region6: #{tpu_custom_call.1} parent=0 // loop_footer
    %s12 = sadd.s32 1, %s8
  $region7: #{tpu_custom_call.1} parent=0 // loop_footer_branch
    %7 = sbr.rel target = $region3
  $region8: #{tpu_custom_call.1} parent=0 // loop_exit
    _

</llo_original>
